<compile_context>
chip_gen: v7x
topology: tpu7x:2x2x1
jax: 0.10.0
libtpu: 0.0.40
codegen_flags: <defaults>
</compile_context>

<pallas_src>
import jax
import jax.numpy as jnp
from jax.experimental import pallas as pl

# ---- small, self-consistent problem sizes (mirror the torch module's params) ----
B = 2            # batch
V = 4            # params['max_num_visits']
C = 8            # codes per visit (embedding lookup length)
E = 32           # params['emb_dim']
NUM_CODES = 50   # len(params['code2idx'])
NUM_CAT = 10     # len(params['category2idx'])

K1, K2, K3 = 3, 4, 5
L1 = E - K1 + 1          # 30
L2 = L1 - K2 + 1         # 27
L3 = L2 - K3 + 1         # 23  == emb_dim - 3 - 4 - 5 + 3  (fc1 in_features)

# ---- packed weight-slab layout (single DMA) --------------------------------
ROW_W1 = 0                       # rows 0:32   cols 0:12   -> conv1 weight
COL_B1 = K1 * V                  # rows 0:32   col 12      -> conv1 bias
ROW_W2 = E                       # rows 32:64  cols 0:128  -> conv2 weight
COL_B2 = K2 * E                  # rows 32:64  col 128     -> conv2 bias
ROW_W3 = 2 * E                   # rows 64:74  cols 0:160  -> conv3 weight
ROW_B3 = 2 * E + NUM_CAT         # rows 74:84  col 0       -> conv3 bias
ROW_WFC = ROW_B3 + NUM_CAT       # rows 84:130 cols 0:2    -> block-diag fc1 weight
ROW_BFC = ROW_WFC + B * L3       # row 130     col 0       -> fc1 bias
SLAB_ROWS = ROW_BFC + 1          # 131
SLAB_COLS = K3 * E               # 160


def cnn_kernel(x1_ref, w_ref, out_ref):
    # ---- conv1: one dot  (E, K1*V) @ (K1*V, B*L1) -> (E, B*L1) ----
    w1 = w_ref[ROW_W1:ROW_W1 + E, 0:K1 * V]
    b1 = w_ref[ROW_W1:ROW_W1 + E, COL_B1:COL_B1 + 1]
    h1 = jnp.maximum(
        jnp.dot(w1, x1_ref[...], preferred_element_type=jnp.float32) + b1, 0.0)

    # ---- conv2: im2col built as a value (stays in vregs), one dot ----
    #      (E, K2*E=128) @ (K2*E, B*L2) -> (E, B*L2)
    w2 = w_ref[ROW_W2:ROW_W2 + E, 0:K2 * E]
    b2 = w_ref[ROW_W2:ROW_W2 + E, COL_B2:COL_B2 + 1]
    x2 = jnp.concatenate(
        [jnp.concatenate([h1[:, b * L1 + k: b * L1 + k + L2] for k in range(K2)],
                         axis=0)
         for b in range(B)], axis=1)                               # (K2*E, B*L2)
    h2 = jnp.maximum(
        jnp.dot(w2, x2, preferred_element_type=jnp.float32) + b2, 0.0)

    # ---- conv3: same pattern  (NC, K3*E=160) @ (K3*E, B*L3) -> (NC, B*L3) ----
    w3 = w_ref[ROW_W3:ROW_W3 + NUM_CAT, 0:K3 * E]
    b3 = w_ref[ROW_B3:ROW_B3 + NUM_CAT, 0:1]
    x3 = jnp.concatenate(
        [jnp.concatenate([h2[:, b * L2 + k: b * L2 + k + L3] for k in range(K3)],
                         axis=0)
         for b in range(B)], axis=1)                               # (K3*E, B*L3)
    h3 = jnp.maximum(
        jnp.dot(w3, x3, preferred_element_type=jnp.float32) + b3, 0.0)

    # ---- fc1 + sigmoid: single dot vs block-diagonal weight, full-block store ----
    wfc = w_ref[ROW_WFC:ROW_WFC + B * L3, 0:B]                     # (B*L3, B)
    bfc = w_ref[ROW_BFC:ROW_BFC + 1, 0:1]                          # (1, 1)
    logits = jnp.dot(h3, wfc, preferred_element_type=jnp.float32) + bfc
    out_ref[...] = jax.nn.sigmoid(logits)                          # (NUM_CAT, B)


# ----------------------- one-time parameter preparation ---------------------
def pack_params(params):
    """Re-layout + pack all weights/biases into one f32 slab (done once at init)."""
    emb_table, w1, b1, w2, b2, w3, b3, wfc, bfc = params

    # (Cout, Cin, K) -> (Cout, K*Cin), matching the im2col row order k*Cin + cin.
    w1_r = jnp.transpose(w1, (0, 2, 1)).reshape(E, K1 * V)
    w2_r = jnp.transpose(w2, (0, 2, 1)).reshape(E, K2 * E)
    w3_r = jnp.transpose(w3, (0, 2, 1)).reshape(NUM_CAT, K3 * E)

    # Block-diagonal fc1 weight: wfc_blk[b*L3 + l, b] = wfc[0, l].
    wfc_blk = jnp.zeros((B * L3, B), jnp.float32)
    for b in range(B):
        wfc_blk = wfc_blk.at[b * L3:(b + 1) * L3, b].set(wfc[0])

    slab = jnp.zeros((SLAB_ROWS, SLAB_COLS), jnp.float32)
    slab = slab.at[ROW_W1:ROW_W1 + E, 0:K1 * V].set(w1_r)
    slab = slab.at[ROW_W1:ROW_W1 + E, COL_B1].set(b1)
    slab = slab.at[ROW_W2:ROW_W2 + E, 0:K2 * E].set(w2_r)
    slab = slab.at[ROW_W2:ROW_W2 + E, COL_B2].set(b2)
    slab = slab.at[ROW_W3:ROW_W3 + NUM_CAT, 0:K3 * E].set(w3_r)
    slab = slab.at[ROW_B3:ROW_B3 + NUM_CAT, 0].set(b3)
    slab = slab.at[ROW_WFC:ROW_WFC + B * L3, 0:B].set(wfc_blk)
    slab = slab.at[ROW_BFC, 0].set(bfc[0])
    return emb_table, slab


def cnn_forward(x, masks, rev_x, rev_masks, emb_table, w_slab):
    """rev_x / rev_masks are unused by the torch forward; kept for signature parity."""
    del rev_x, rev_masks

    # sum_embeddings_with_mask: gather + masked reduce of the *input* — done in XLA
    # so the kernel only DMAs the tiny im2col'ed (K1*V, B*L1) slab + the weight slab.
    emb = emb_table[x]                                             # (B, V, C, E)
    m = (masks != 0).astype(jnp.float32)[..., None]                # (B, V, C, 1)
    summed = jnp.sum(emb * m, axis=2)                              # (B, V, E)

    # conv1 im2col of the input: X1[k*V + v, b*L1 + l] = summed[b, v, k + l]
    x1 = jnp.stack([summed[:, :, k:k + L1] for k in range(K1)], axis=1)  # (B,K1,V,L1)
    x1 = x1.transpose(1, 2, 0, 3).reshape(K1 * V, B * L1)                # (12, 60)

    out_nb = pl.pallas_call(
        cnn_kernel,
        out_shape=jax.ShapeDtypeStruct((NUM_CAT, B), jnp.float32),
    )(x1, w_slab)

    return out_nb.T                                                # (B, NUM_CAT)


# ----------------------- deterministic parameter init -----------------------
def init_params(key):
    ks = jax.random.split(key, 9)

    def xavier_conv(k, co, ci, kk):
        std = (2.0 / (ci * kk + co * kk)) ** 0.5
        return std * jax.random.normal(k, (co, ci, kk), jnp.float32)

    emb_table = jax.random.normal(ks[0], (NUM_CODES, E), jnp.float32)
    w1 = xavier_conv(ks[1], E, V, K1)
    b1 = 0.1 * jax.random.normal(ks[2], (E,), jnp.float32)
    w2 = xavier_conv(ks[3], E, E, K2)
    b2 = 0.1 * jax.random.normal(ks[4], (E,), jnp.float32)
    w3 = xavier_conv(ks[5], NUM_CAT, E, K3)
    b3 = 0.1 * jax.random.normal(ks[6], (NUM_CAT,), jnp.float32)
    std_fc = (2.0 / (L3 + 1)) ** 0.5
    wfc = std_fc * jax.random.normal(ks[7], (1, L3), jnp.float32)
    bfc = 0.1 * jax.random.normal(ks[8], (1,), jnp.float32)
    return (emb_table, w1, b1, w2, b2, w3, b3, wfc, bfc)


# ----------------------- pure-JAX reference (correctness check) -------------
def reference(x, masks, params):
    emb_table, w1, b1, w2, b2, w3, b3, wfc, bfc = params
    emb = emb_table[x]                                             # (B, V, C, E)
    m = (masks != 0).astype(jnp.float32)[..., None]
    summed = jnp.sum(emb * m, axis=2)                              # (B, V, E)

    def conv1d(inp, w, b):
        co, ci, kk = w.shape
        lout = inp.shape[-1] - kk + 1
        out = jnp.zeros((inp.shape[0], co, lout), jnp.float32)
        for k in range(kk):
            out = out + jnp.einsum('oc,bcl->bol', w[:, :, k], inp[:, :, k:k + lout])
        return out + b[None, :, None]

    h1 = jax.nn.relu(conv1d(summed, w1, b1))
    h2 = jax.nn.relu(conv1d(h1, w2, b2))
    h3 = jax.nn.relu(conv1d(h2, w3, b3))
    logits = jnp.einsum('bnl,ol->bno', h3, wfc)[..., 0] + bfc[0]   # (B, NUM_CAT)
    return jax.nn.sigmoid(logits)


if __name__ == "__main__":
    key = jax.random.PRNGKey(0)
    k_x, k_m, k_p = jax.random.split(key, 3)

    x = jax.random.randint(k_x, (B, V, C), 0, NUM_CODES, dtype=jnp.int32)
    masks = jax.random.bernoulli(k_m, 0.7, (B, V, C)).astype(jnp.float32)
    rev_x = x[:, ::-1, :]
    rev_masks = masks[:, ::-1, :]
    params = init_params(k_p)

    # One-time parameter preparation (re-layout + pack into a single slab).
    emb_table, w_slab = pack_params(params)

    out = jax.block_until_ready(
        cnn_forward(x, masks, rev_x, rev_masks, emb_table, w_slab))
    ref = reference(x, masks, params)

    assert out.shape == (B, NUM_CAT), out.shape
    assert jnp.allclose(out, ref, atol=1e-5, rtol=1e-5), (out, ref)
    print("KERNEL_OK")
</pallas_src>

<mosaic_0001>
module attributes {stable_mosaic.version = 11 : i64} {
  func.func @cnn_kernel(%arg0: memref<12x60xf32, #tpu.memory_space<vmem>>, %arg1: memref<131x160xf32, #tpu.memory_space<vmem>>, %arg2: memref<10x2xf32, #tpu.memory_space<vmem>>) attributes {dimension_semantics = [], scalar_prefetch = 0 : i64, scratch_operands = 0 : i64, tpu.core_type = #tpu.core_type<tc>} {
    %c0 = arith.constant 0 : index
    %c0_0 = arith.constant 0 : index
    %0 = vector.load %arg1[%c0, %c0_0] : memref<131x160xf32, #tpu.memory_space<vmem>>, vector<32x12xf32>
    %c0_1 = arith.constant 0 : index
    %c12 = arith.constant 12 : index
    %1 = vector.load %arg1[%c0_1, %c12] : memref<131x160xf32, #tpu.memory_space<vmem>>, vector<32x1xf32>
    %c0_2 = arith.constant 0 : index
    %c0_3 = arith.constant 0 : index
    %2 = vector.load %arg0[%c0_2, %c0_3] : memref<12x60xf32, #tpu.memory_space<vmem>>, vector<12x60xf32>
    %cst = arith.constant dense<0.000000e+00> : vector<32x60xf32>
    %3 = tpu.matmul %0, %2, %cst {dimension_numbers = #tpu.dot_dimension_numbers<[1], [0], [0], [1], [0, 0, 1, 1], [], []>} : vector<32x12xf32>, vector<12x60xf32>, vector<32x60xf32> -> vector<32x60xf32>
    %4 = vector.broadcast %1 : vector<32x1xf32> to vector<32x60xf32>
    %5 = arith.addf %3, %4 : vector<32x60xf32>
    %cst_4 = arith.constant 0.000000e+00 : f32
    %6 = vector.broadcast %cst_4 : f32 to vector<32x60xf32>
    %7 = arith.maximumf %5, %6 : vector<32x60xf32>
    %c32 = arith.constant 32 : index
    %c0_5 = arith.constant 0 : index
    %8 = vector.load %arg1[%c32, %c0_5] : memref<131x160xf32, #tpu.memory_space<vmem>>, vector<32x128xf32>
    %c32_6 = arith.constant 32 : index
    %c128 = arith.constant 128 : index
    %9 = vector.load %arg1[%c32_6, %c128] : memref<131x160xf32, #tpu.memory_space<vmem>>, vector<32x1xf32>
    %10 = vector.extract_strided_slice %7 {offsets = [0, 0], sizes = [32, 27], strides = [1, 1]} : vector<32x60xf32> to vector<32x27xf32>
    %11 = vector.extract_strided_slice %7 {offsets = [0, 1], sizes = [32, 27], strides = [1, 1]} : vector<32x60xf32> to vector<32x27xf32>
    %12 = vector.extract_strided_slice %7 {offsets = [0, 2], sizes = [32, 27], strides = [1, 1]} : vector<32x60xf32> to vector<32x27xf32>
    %13 = vector.extract_strided_slice %7 {offsets = [0, 3], sizes = [32, 27], strides = [1, 1]} : vector<32x60xf32> to vector<32x27xf32>
    %14 = tpu.concatenate %10, %11, %12, %13 in 0 : vector<32x27xf32>, vector<32x27xf32>, vector<32x27xf32>, vector<32x27xf32> -> vector<128x27xf32>
    %15 = vector.extract_strided_slice %7 {offsets = [0, 30], sizes = [32, 27], strides = [1, 1]} : vector<32x60xf32> to vector<32x27xf32>
    %16 = vector.extract_strided_slice %7 {offsets = [0, 31], sizes = [32, 27], strides = [1, 1]} : vector<32x60xf32> to vector<32x27xf32>
    %17 = vector.extract_strided_slice %7 {offsets = [0, 32], sizes = [32, 27], strides = [1, 1]} : vector<32x60xf32> to vector<32x27xf32>
    %18 = vector.extract_strided_slice %7 {offsets = [0, 33], sizes = [32, 27], strides = [1, 1]} : vector<32x60xf32> to vector<32x27xf32>
    %19 = tpu.concatenate %15, %16, %17, %18 in 0 : vector<32x27xf32>, vector<32x27xf32>, vector<32x27xf32>, vector<32x27xf32> -> vector<128x27xf32>
    %20 = tpu.concatenate %14, %19 in 1 : vector<128x27xf32>, vector<128x27xf32> -> vector<128x54xf32>
    %cst_7 = arith.constant dense<0.000000e+00> : vector<32x54xf32>
    %21 = tpu.matmul %8, %20, %cst_7 {dimension_numbers = #tpu.dot_dimension_numbers<[1], [0], [0], [1], [0, 0, 1, 1], [], []>} : vector<32x128xf32>, vector<128x54xf32>, vector<32x54xf32> -> vector<32x54xf32>
    %22 = vector.broadcast %9 : vector<32x1xf32> to vector<32x54xf32>
    %23 = arith.addf %21, %22 : vector<32x54xf32>
    %cst_8 = arith.constant 0.000000e+00 : f32
    %24 = vector.broadcast %cst_8 : f32 to vector<32x54xf32>
    %25 = arith.maximumf %23, %24 : vector<32x54xf32>
    %c64 = arith.constant 64 : index
    %c0_9 = arith.constant 0 : index
    %26 = vector.load %arg1[%c64, %c0_9] : memref<131x160xf32, #tpu.memory_space<vmem>>, vector<10x160xf32>
    %c74 = arith.constant 74 : index
    %c0_10 = arith.constant 0 : index
    %27 = vector.load %arg1[%c74, %c0_10] : memref<131x160xf32, #tpu.memory_space<vmem>>, vector<10x1xf32>
    %28 = vector.extract_strided_slice %25 {offsets = [0, 0], sizes = [32, 23], strides = [1, 1]} : vector<32x54xf32> to vector<32x23xf32>
    %29 = vector.extract_strided_slice %25 {offsets = [0, 1], sizes = [32, 23], strides = [1, 1]} : vector<32x54xf32> to vector<32x23xf32>
    %30 = vector.extract_strided_slice %25 {offsets = [0, 2], sizes = [32, 23], strides = [1, 1]} : vector<32x54xf32> to vector<32x23xf32>
    %31 = vector.extract_strided_slice %25 {offsets = [0, 3], sizes = [32, 23], strides = [1, 1]} : vector<32x54xf32> to vector<32x23xf32>
    %32 = vector.extract_strided_slice %25 {offsets = [0, 4], sizes = [32, 23], strides = [1, 1]} : vector<32x54xf32> to vector<32x23xf32>
    %33 = tpu.concatenate %28, %29, %30, %31, %32 in 0 : vector<32x23xf32>, vector<32x23xf32>, vector<32x23xf32>, vector<32x23xf32>, vector<32x23xf32> -> vector<160x23xf32>
    %34 = vector.extract_strided_slice %25 {offsets = [0, 27], sizes = [32, 23], strides = [1, 1]} : vector<32x54xf32> to vector<32x23xf32>
    %35 = vector.extract_strided_slice %25 {offsets = [0, 28], sizes = [32, 23], strides = [1, 1]} : vector<32x54xf32> to vector<32x23xf32>
    %36 = vector.extract_strided_slice %25 {offsets = [0, 29], sizes = [32, 23], strides = [1, 1]} : vector<32x54xf32> to vector<32x23xf32>
    %37 = vector.extract_strided_slice %25 {offsets = [0, 30], sizes = [32, 23], strides = [1, 1]} : vector<32x54xf32> to vector<32x23xf32>
    %38 = vector.extract_strided_slice %25 {offsets = [0, 31], sizes = [32, 23], strides = [1, 1]} : vector<32x54xf32> to vector<32x23xf32>
    %39 = tpu.concatenate %34, %35, %36, %37, %38 in 0 : vector<32x23xf32>, vector<32x23xf32>, vector<32x23xf32>, vector<32x23xf32>, vector<32x23xf32> -> vector<160x23xf32>
    %40 = tpu.concatenate %33, %39 in 1 : vector<160x23xf32>, vector<160x23xf32> -> vector<160x46xf32>
    %cst_11 = arith.constant dense<0.000000e+00> : vector<10x46xf32>
    %41 = tpu.matmul %26, %40, %cst_11 {dimension_numbers = #tpu.dot_dimension_numbers<[1], [0], [0], [1], [0, 0, 1, 1], [], []>} : vector<10x160xf32>, vector<160x46xf32>, vector<10x46xf32> -> vector<10x46xf32>
    %42 = vector.broadcast %27 : vector<10x1xf32> to vector<10x46xf32>
    %43 = arith.addf %41, %42 : vector<10x46xf32>
    %cst_12 = arith.constant 0.000000e+00 : f32
    %44 = vector.broadcast %cst_12 : f32 to vector<10x46xf32>
    %45 = arith.maximumf %43, %44 : vector<10x46xf32>
    %c84 = arith.constant 84 : index
    %c0_13 = arith.constant 0 : index
    %46 = vector.load %arg1[%c84, %c0_13] : memref<131x160xf32, #tpu.memory_space<vmem>>, vector<46x2xf32>
    %c130 = arith.constant 130 : index
    %c0_14 = arith.constant 0 : index
    %47 = vector.load %arg1[%c130, %c0_14] : memref<131x160xf32, #tpu.memory_space<vmem>>, vector<1x1xf32>
    %cst_15 = arith.constant dense<0.000000e+00> : vector<10x2xf32>
    %48 = tpu.matmul %45, %46, %cst_15 {dimension_numbers = #tpu.dot_dimension_numbers<[1], [0], [0], [1], [0, 0, 1, 1], [], []>} : vector<10x46xf32>, vector<46x2xf32>, vector<10x2xf32> -> vector<10x2xf32>
    %49 = vector.broadcast %47 : vector<1x1xf32> to vector<10x2xf32>
    %50 = arith.addf %48, %49 : vector<10x2xf32>
    %51 = arith.negf %50 : vector<10x2xf32>
    %52 = math.exp %51 : vector<10x2xf32>
    %cst_16 = arith.constant 1.000000e+00 : f32
    %53 = vector.broadcast %cst_16 : f32 to vector<10x2xf32>
    %54 = arith.addf %53, %52 : vector<10x2xf32>
    %55 = arith.divf %53, %54 : vector<10x2xf32>
    %c0_17 = arith.constant 0 : index
    %c0_18 = arith.constant 0 : index
    %56 = vector.load %arg2[%c0_17, %c0_18] : memref<10x2xf32, #tpu.memory_space<vmem>>, vector<10x2xf32>
    tpu.vector_store %arg2[%c0_17, %c0_18], %55 {strides = array<i32>} : memref<10x2xf32, #tpu.memory_space<vmem>>, vector<10x2xf32>,
    return
  }
}

</mosaic_0001>

<llo_original>
// kernel: tpu_custom_call.1
$region0: #{tpu_custom_call.1}
  #allocation0 [shape = 'u32[]', space=smem, size = 0x4, offset = 0x4, fixed_abs, tag = 'smem constant byte address 0x4 - core index']
  #allocation1 [shape = 'u32[144,128]{1,0:T(1,128)}', space=vmem, size = 0x12000, scoped, tag = 'internal scratch']
  %s0 = inlined_call_operand.hbm [shape: f32[12,60], index: 0, kind: input, shape index: {}]
  %s1 = inlined_call_operand.hbm [shape: f32[131,160], index: 1, kind: input, shape index: {}]
  %s2 = inlined_call_operand.vmem [shape: f32[10,2], index: 2, kind: output, shape index: {}]
  %s3 = sld [smem:[#allocation0]]
  $region26: #{tpu_custom_call.1} parent=0
    _
  %s5 = ssub.s32 1, %s3
  %s6 = scalar_select 0, %s5, %s3
  $region1: #{tpu_custom_call.1} parent=0
    #allocation2 [shape = 'u8[8192]{0}', space=vmem, size = 0x2000, scoped, tag = 'input window, operand 0, single buffered']
    #allocation3 [shape = 's32[1]{0}', space=sflag, size = 0x4, scoped, tag = 'scoped memory for tpu_custom_call.1']
    #allocation4 [shape = 'u8[139264]{0}', space=vmem, size = 0x22000, scoped, tag = 'input window, operand 1, single buffered']
    #allocation5 [shape = 's32[1]{0}', space=sflag, size = 0x4, scoped, tag = 'scoped memory for tpu_custom_call.1']
    %7 = vsyncpa [#allocation3], 0
    %8 = vsyncpa [#allocation5], 0
    // Predicated region
    $region2: #{tpu_custom_call.1} parent=1 // pred_check
      _
    $region3: #{tpu_custom_call.1} parent=1 // pred_check_branch
      %10 = sbr.rel (0) target = $region5
    $region4: #{tpu_custom_call.1} parent=1 // pred_region
      %s12 = ssub.s32 256, 256
      %13 = vsyncadd [#allocation3], %s12
      %s14 = sshll.u32 [#allocation2], 4
      %s15 = int_to_ptr.vmem [resolvable:$true] %s14
      %20 = dma.hbm_to_vmem [thread:$0]  %s0, 256, %s15, [#allocation3], 128, 128, 8
    $region5: #{tpu_custom_call.1} parent=1 // pred_fallthru
      _
    // Predicated region
    $region6: #{tpu_custom_call.1} parent=1 // pred_check
      _
    $region7: #{tpu_custom_call.1} parent=1 // pred_check_branch
      %22 = sbr.rel (0) target = $region9
    $region8: #{tpu_custom_call.1} parent=1 // pred_region
      %s24 = ssub.s32 4352, 4352
      %25 = vsyncadd [#allocation5], %s24
      %s26 = sshll.u32 [#allocation4], 4
      %s27 = int_to_ptr.vmem [resolvable:$true] %s26
      %32 = dma.hbm_to_vmem [thread:$0]  %s1, 4352, %s27, [#allocation5], 256, 256, 16
    $region9: #{tpu_custom_call.1} parent=1 // pred_fallthru
      _
    // Predicated region
    $region10: #{tpu_custom_call.1} parent=1 // pred_check
      _
    $region11: #{tpu_custom_call.1} parent=1 // pred_check_branch
      %34 = sbr.rel (0) target = $region13
    $region12: #{tpu_custom_call.1} parent=1 // pred_region
      %35 = dma.done [#allocation3], 256
    $region13: #{tpu_custom_call.1} parent=1 // pred_fallthru
      _
    // Predicated region
    $region14: #{tpu_custom_call.1} parent=1 // pred_check
      _
    $region15: #{tpu_custom_call.1} parent=1 // pred_check_branch
      %37 = sbr.rel (0) target = $region17
    $region16: #{tpu_custom_call.1} parent=1 // pred_region
      %38 = dma.done [#allocation5], 4352
    $region17: #{tpu_custom_call.1} parent=1 // pred_fallthru
      _
    %v39 = vld [vmem:[#allocation4] sm:$0xff]
    %v40 = vld [vmem:[#allocation4 + $0x10] sm:$0xff]
    %v41 = vld [vmem:[#allocation4 + $0x20] sm:$0xff]
    %v42 = vld [vmem:[#allocation4 + $0x30] sm:$0xff]
    %v43 = vld [vmem:[#allocation2] sm:$0xff]
    %v44 = vld [vmem:[#allocation2 + $0x8] sm:$0xf]
    %46 = vset.pattern.permute.xlu0 12
    %47 = vperm.xlu0 %46, %v39
    %v48 = vpop.permute.xlu0 %47
    %51 = vset.pattern.permute.xlu0 12
    %52 = vperm.xlu0 %51, %v40
    %v53 = vpop.permute.xlu0 %52
    %56 = vset.pattern.permute.xlu0 12
    %57 = vperm.xlu0 %56, %v41
    %v58 = vpop.permute.xlu0 %57
    %61 = vset.pattern.permute.xlu0 12
    %62 = vperm.xlu0 %61, %v42
    %v63 = vpop.permute.xlu0 %62
    %vm65 = vcmask 97280
    %v66 = vsel %vm65, %v39, 0
    %v68 = vsel %vm65, %v40, 0
    %v70 = vsel %vm65, %v41, 0
    %v72 = vsel %vm65, %v42, 0
    %vm74 = vcmask 1043456
    %v76 = vsel %vm74, %v44, 0
    %78 = vmatprep.subr.mxu0 0.0
    %79 = vmatpush1.msra.mxu0 %v43
    %80 = vmatprep.subr.mxu0 0.0
    %81 = vmatpush1.msra.mxu0 %v76
    %82 = vmatprep.subr.mxu0 0.0
    %83 = vmatpush1.msra.mxu0 0.0
    %84 = vmatprep.subr.mxu0 0.0
    %85 = vmatpush1.msra.mxu0 0.0
    %86 = vmatprep.subr.mxu0 0.0
    %87 = vmatpush1.msra.mxu0 0.0
    %88 = vmatprep.subr.mxu0 0.0
    %89 = vmatpush1.msra.mxu0 0.0
    %90 = vmatprep.subr.mxu0 0.0
    %91 = vmatpush1.msra.mxu0 0.0
    %92 = vmatprep.subr.mxu0 0.0
    %93 = vmatpush1.msra.mxu0 0.0
    %94 = vmatprep.subr.mxu0 0.0
    %95 = vmatpush1.msra.mxu0 0.0
    %96 = vmatprep.subr.mxu0 0.0
    %97 = vmatpush1.msra.mxu0 0.0
    %98 = vmatprep.subr.mxu0 0.0
    %99 = vmatpush1.msra.mxu0 0.0
    %100 = vmatprep.subr.mxu0 0.0
    %101 = vmatpush1.msra.mxu0 0.0
    %102 = vmatprep.subr.mxu0 0.0
    %103 = vmatpush1.msra.mxu0 0.0
    %104 = vmatprep.subr.mxu0 0.0
    %105 = vmatpush1.msra.mxu0 0.0
    %106 = vmatprep.subr.mxu0 0.0
    %107 = vmatpush1.msra.mxu0 0.0
    %108 = vmatprep.subr.mxu0 0.0
    %109 = vmatpush1.msra.mxu0 0.0
    %110 = vmatprep.subr.mxu0 0.0
    %111 = vmatpush1.msra.mxu0 0.0
    %112 = vmatprep.subr.mxu0 0.0
    %113 = vmatpush1.msra.mxu0 0.0
    %114 = vmatprep.subr.mxu0 0.0
    %115 = vmatpush1.msra.mxu0 0.0
    %116 = vmatprep.subr.mxu0 0.0
    %117 = vmatpush1.msra.mxu0 0.0
    %118 = vmatprep.subr.mxu0 0.0
    %119 = vmatpush1.msra.mxu0 0.0
    %120 = vmatprep.subr.mxu0 0.0
    %121 = vmatpush1.msra.mxu0 0.0
    %122 = vmatprep.subr.mxu0 0.0
    %123 = vmatpush1.msra.mxu0 0.0
    %124 = vmatprep.subr.mxu0 0.0
    %125 = vmatpush1.msra.mxu0 0.0
    %126 = vmatprep.subr.mxu0 0.0
    %127 = vmatpush1.msra.mxu0 0.0
    %128 = vmatprep.subr.mxu0 0.0
    %129 = vmatpush1.msra.mxu0 0.0
    %130 = vmatprep.subr.mxu0 0.0
    %131 = vmatpush1.msra.mxu0 0.0
    %132 = vmatprep.subr.mxu0 0.0
    %133 = vmatpush1.msra.mxu0 0.0
    %134 = vmatprep.subr.mxu0 0.0
    %135 = vmatpush1.msra.mxu0 0.0
    %136 = vmatprep.subr.mxu0 0.0
    %137 = vmatpush1.msra.mxu0 0.0
    %138 = vmatprep.subr.mxu0 0.0
    %139 = vmatpush1.msra.mxu0 0.0
    %140 = vmatprep.subr.mxu0 0.0
    %141 = vmatpush1.msra.mxu0 0.0
    %142 = vmatprep.mubr.f32.mxu0 0.0
    %143 = vmatmul.mubr.f32.gmra.mrb[0].mxu0 %v66
    %v144 = vpop.f32.mrb[0].mxu0
    %v145 = vadd.f32 %v48, %v144
    %v146 = vpop.f32.mrb[0].mxu0
    %147 = vmatprep.mubr.f32.mxu0 0.0
    %148 = vmatmul.mubr.f32.gmra.mrb[0].mxu0 %v68
    %v149 = vpop.f32.mrb[0].mxu0
    %v150 = vadd.f32 %v53, %v149
    %v151 = vpop.f32.mrb[0].mxu0
    %152 = vmatprep.mubr.f32.mxu0 0.0
    %153 = vmatmul.mubr.f32.gmra.mrb[0].mxu0 %v70
    %v154 = vpop.f32.mrb[0].mxu0
    %v155 = vadd.f32 %v58, %v154
    %v156 = vpop.f32.mrb[0].mxu0
    %157 = vmatprep.mubr.f32.mxu0 0.0
    %158 = vmatmul.mubr.f32.gmra.mrb[0].mxu0 %v72
    %v159 = vpop.f32.mrb[0].mxu0
    %v160 = vadd.f32 %v63, %v159
    %v161 = vpop.f32.mrb[0].mxu0
    %162 = vdwg.mxu0
    %v163 = vmax.f32 %v145, 0.0
    %v164 = vmax.f32 %v150, 0.0
    %v165 = vmax.f32 %v155, 0.0
    %v166 = vmax.f32 %v160, 0.0
    %v167 = vld [vmem:[#allocation4 + $0x40] sm:$0xff]
    %v168 = vld [vmem:[#allocation4 + $0x50] sm:$0xff]
    %v169 = vld [vmem:[#allocation4 + $0x60] sm:$0xff]
    %v170 = vld [vmem:[#allocation4 + $0x70] sm:$0xff]
    %v171 = vld [vmem:[#allocation4 + $0x48] sm:$0xff]
    %v172 = vld [vmem:[#allocation4 + $0x58] sm:$0xff]
    %v173 = vld [vmem:[#allocation4 + $0x68] sm:$0xff]
    %v174 = vld [vmem:[#allocation4 + $0x78] sm:$0xff]
    %179 = vrot.lane.b32.xlu0 %v163, 127
    %v180 = vpop.permute.xlu0 %179
    %181 = vrot.lane.b32.xlu0 %v164, 127
    %v182 = vpop.permute.xlu0 %181
    %183 = vrot.lane.b32.xlu0 %v165, 127
    %v184 = vpop.permute.xlu0 %183
    %185 = vrot.lane.b32.xlu0 %v166, 127
    %v186 = vpop.permute.xlu0 %185
    %191 = vrot.lane.b32.xlu0 %v163, 126
    %v192 = vpop.permute.xlu0 %191
    %193 = vrot.lane.b32.xlu0 %v164, 126
    %v194 = vpop.permute.xlu0 %193
    %195 = vrot.lane.b32.xlu0 %v165, 126
    %v196 = vpop.permute.xlu0 %195
    %197 = vrot.lane.b32.xlu0 %v166, 126
    %v198 = vpop.permute.xlu0 %197
    %203 = vrot.lane.b32.xlu0 %v163, 125
    %v204 = vpop.permute.xlu0 %203
    %205 = vrot.lane.b32.xlu0 %v164, 125
    %v206 = vpop.permute.xlu0 %205
    %207 = vrot.lane.b32.xlu0 %v165, 125
    %v208 = vpop.permute.xlu0 %207
    %209 = vrot.lane.b32.xlu0 %v166, 125
    %v210 = vpop.permute.xlu0 %209
    %215 = vrot.lane.b32.xlu0 %v180, 125
    %v216 = vpop.permute.xlu0 %215
    %217 = vrot.lane.b32.xlu0 %v182, 125
    %v218 = vpop.permute.xlu0 %217
    %219 = vrot.lane.b32.xlu0 %v184, 125
    %v220 = vpop.permute.xlu0 %219
    %221 = vrot.lane.b32.xlu0 %v186, 125
    %v222 = vpop.permute.xlu0 %221
    %223 = vrot.lane.b32.xlu0 %v192, 125
    %v224 = vpop.permute.xlu0 %223
    %225 = vrot.lane.b32.xlu0 %v194, 125
    %v226 = vpop.permute.xlu0 %225
    %227 = vrot.lane.b32.xlu0 %v196, 125
    %v228 = vpop.permute.xlu0 %227
    %229 = vrot.lane.b32.xlu0 %v198, 125
    %v230 = vpop.permute.xlu0 %229
    %231 = vrot.lane.b32.xlu0 %v204, 125
    %v232 = vpop.permute.xlu0 %231
    %233 = vrot.lane.b32.xlu0 %v206, 125
    %v234 = vpop.permute.xlu0 %233
    %235 = vrot.lane.b32.xlu0 %v208, 125
    %v236 = vpop.permute.xlu0 %235
    %237 = vrot.lane.b32.xlu0 %v210, 125
    %v238 = vpop.permute.xlu0 %237
    %vm251 = vcmask 220160
    %v252 = vsel %vm251, %v163, %v204
    %v253 = vsel %vm251, %v164, %v206
    %v254 = vsel %vm251, %v165, %v208
    %v255 = vsel %vm251, %v166, %v210
    %v256 = vsel %vm251, %v180, %v216
    %v257 = vsel %vm251, %v182, %v218
    %v258 = vsel %vm251, %v184, %v220
    %v259 = vsel %vm251, %v186, %v222
    %v260 = vsel %vm251, %v192, %v224
    %v261 = vsel %vm251, %v194, %v226
    %v262 = vsel %vm251, %v196, %v228
    %v263 = vsel %vm251, %v198, %v230
    %v264 = vsel %vm251, %v204, %v232
    %v265 = vsel %vm251, %v206, %v234
    %v266 = vsel %vm251, %v208, %v236
    %v267 = vsel %vm251, %v210, %v238
    %269 = vset.pattern.permute.xlu0 0
    %270 = vperm.xlu0 %269, %v171
    %v271 = vpop.permute.xlu0 %270
    %274 = vset.pattern.permute.xlu0 0
    %275 = vperm.xlu0 %274, %v172
    %v276 = vpop.permute.xlu0 %275
    %279 = vset.pattern.permute.xlu0 0
    %280 = vperm.xlu0 %279, %v173
    %v281 = vpop.permute.xlu0 %280
    %284 = vset.pattern.permute.xlu0 0
    %285 = vperm.xlu0 %284, %v174
    %v286 = vpop.permute.xlu0 %285
    %288 = vmatprep.subr.mxu0 0.0
    %289 = vmatpush1.msra.mxu0 %v252
    %290 = vmatprep.subr.mxu0 0.0
    %291 = vmatpush1.msra.mxu0 %v253
    %292 = vmatprep.subr.mxu0 0.0
    %293 = vmatpush1.msra.mxu0 %v254
    %294 = vmatprep.subr.mxu0 0.0
    %295 = vmatpush1.msra.mxu0 %v255
    %296 = vmatprep.subr.mxu0 0.0
    %297 = vmatpush1.msra.mxu0 %v256
    %298 = vmatprep.subr.mxu0 0.0
    %299 = vmatpush1.msra.mxu0 %v257
    %300 = vmatprep.subr.mxu0 0.0
    %301 = vmatpush1.msra.mxu0 %v258
    %302 = vmatprep.subr.mxu0 0.0
    %303 = vmatpush1.msra.mxu0 %v259
    %304 = vmatprep.subr.mxu0 0.0
    %305 = vmatpush1.msra.mxu0 %v260
    %306 = vmatprep.subr.mxu0 0.0
    %307 = vmatpush1.msra.mxu0 %v261
    %308 = vmatprep.subr.mxu0 0.0
    %309 = vmatpush1.msra.mxu0 %v262
    %310 = vmatprep.subr.mxu0 0.0
    %311 = vmatpush1.msra.mxu0 %v263
    %312 = vmatprep.subr.mxu0 0.0
    %313 = vmatpush1.msra.mxu0 %v264
    %314 = vmatprep.subr.mxu0 0.0
    %315 = vmatpush1.msra.mxu0 %v265
    %316 = vmatprep.subr.mxu0 0.0
    %317 = vmatpush1.msra.mxu0 %v266
    %318 = vmatprep.subr.mxu0 0.0
    %319 = vmatpush1.msra.mxu0 %v267
    %320 = vmatprep.subr.mxu0 0.0
    %321 = vmatpush1.msra.mxu0 0.0
    %322 = vmatprep.subr.mxu0 0.0
    %323 = vmatpush1.msra.mxu0 0.0
    %324 = vmatprep.subr.mxu0 0.0
    %325 = vmatpush1.msra.mxu0 0.0
    %326 = vmatprep.subr.mxu0 0.0
    %327 = vmatpush1.msra.mxu0 0.0
    %328 = vmatprep.subr.mxu0 0.0
    %329 = vmatpush1.msra.mxu0 0.0
    %330 = vmatprep.subr.mxu0 0.0
    %331 = vmatpush1.msra.mxu0 0.0
    %332 = vmatprep.subr.mxu0 0.0
    %333 = vmatpush1.msra.mxu0 0.0
    %334 = vmatprep.subr.mxu0 0.0
    %335 = vmatpush1.msra.mxu0 0.0
    %336 = vmatprep.subr.mxu0 0.0
    %337 = vmatpush1.msra.mxu0 0.0
    %338 = vmatprep.subr.mxu0 0.0
    %339 = vmatpush1.msra.mxu0 0.0
    %340 = vmatprep.subr.mxu0 0.0
    %341 = vmatpush1.msra.mxu0 0.0
    %342 = vmatprep.subr.mxu0 0.0
    %343 = vmatpush1.msra.mxu0 0.0
    %344 = vmatprep.subr.mxu0 0.0
    %345 = vmatpush1.msra.mxu0 0.0
    %346 = vmatprep.subr.mxu0 0.0
    %347 = vmatpush1.msra.mxu0 0.0
    %348 = vmatprep.subr.mxu0 0.0
    %349 = vmatpush1.msra.mxu0 0.0
    %350 = vmatprep.subr.mxu0 0.0
    %351 = vmatpush1.msra.mxu0 0.0
    %352 = vmatprep.mubr.f32.mxu0 0.0
    %353 = vmatmul.mubr.f32.gmra.mrb[0].mxu0 %v167
    %v354 = vpop.f32.mrb[0].mxu0
    %v355 = vadd.f32 %v271, %v354
    %v356 = vpop.f32.mrb[0].mxu0
    %357 = vmatprep.mubr.f32.mxu0 0.0
    %358 = vmatmul.mubr.f32.gmra.mrb[0].mxu0 %v168
    %v359 = vpop.f32.mrb[0].mxu0
    %v360 = vadd.f32 %v276, %v359
    %v361 = vpop.f32.mrb[0].mxu0
    %362 = vmatprep.mubr.f32.mxu0 0.0
    %363 = vmatmul.mubr.f32.gmra.mrb[0].mxu0 %v169
    %v364 = vpop.f32.mrb[0].mxu0
    %v365 = vadd.f32 %v281, %v364
    %v366 = vpop.f32.mrb[0].mxu0
    %367 = vmatprep.mubr.f32.mxu0 0.0
    %368 = vmatmul.mubr.f32.gmra.mrb[0].mxu0 %v170
    %v369 = vpop.f32.mrb[0].mxu0
    %v370 = vadd.f32 %v286, %v369
    %v371 = vpop.f32.mrb[0].mxu0
    %372 = vdwg.mxu0
    %v373 = vmax.f32 %v355, 0.0
    %v374 = vmax.f32 %v360, 0.0
    %v375 = vmax.f32 %v365, 0.0
    %v376 = vmax.f32 %v370, 0.0
    %v377 = vld [vmem:[#allocation4 + $0x80] sm:$0xff]
    %v378 = vld [vmem:[#allocation4 + $0x88] sm:$0xff]
    %v379 = vld [vmem:[#allocation4 + $0x90] sm:$0x3]
    %v380 = vld [vmem:[#allocation4 + $0x98] sm:$0x3]
    %v381 = vld [vmem:[#allocation4 + $0x90] sm:$0xfc]
    %v382 = vld [vmem:[#allocation4 + $0xa0] sm:$0xf]
    %387 = vrot.lane.b32.xlu0 %v373, 127
    %v388 = vpop.permute.xlu0 %387
    %389 = vrot.lane.b32.xlu0 %v374, 127
    %v390 = vpop.permute.xlu0 %389
    %391 = vrot.lane.b32.xlu0 %v375, 127
    %v392 = vpop.permute.xlu0 %391
    %393 = vrot.lane.b32.xlu0 %v376, 127
    %v394 = vpop.permute.xlu0 %393
    %399 = vrot.lane.b32.xlu0 %v373, 126
    %v400 = vpop.permute.xlu0 %399
    %401 = vrot.lane.b32.xlu0 %v374, 126
    %v402 = vpop.permute.xlu0 %401
    %403 = vrot.lane.b32.xlu0 %v375, 126
    %v404 = vpop.permute.xlu0 %403
    %405 = vrot.lane.b32.xlu0 %v376, 126
    %v406 = vpop.permute.xlu0 %405
    %411 = vrot.lane.b32.xlu0 %v373, 125
    %v412 = vpop.permute.xlu0 %411
    %413 = vrot.lane.b32.xlu0 %v374, 125
    %v414 = vpop.permute.xlu0 %413
    %415 = vrot.lane.b32.xlu0 %v375, 125
    %v416 = vpop.permute.xlu0 %415
    %417 = vrot.lane.b32.xlu0 %v376, 125
    %v418 = vpop.permute.xlu0 %417
    %423 = vrot.lane.b32.xlu0 %v373, 124
    %v424 = vpop.permute.xlu0 %423
    %425 = vrot.lane.b32.xlu0 %v374, 124
    %v426 = vpop.permute.xlu0 %425
    %427 = vrot.lane.b32.xlu0 %v375, 124
    %v428 = vpop.permute.xlu0 %427
    %429 = vrot.lane.b32.xlu0 %v376, 124
    %v430 = vpop.permute.xlu0 %429
    %435 = vrot.lane.b32.xlu0 %v388, 124
    %v436 = vpop.permute.xlu0 %435
    %437 = vrot.lane.b32.xlu0 %v390, 124
    %v438 = vpop.permute.xlu0 %437
    %439 = vrot.lane.b32.xlu0 %v392, 124
    %v440 = vpop.permute.xlu0 %439
    %441 = vrot.lane.b32.xlu0 %v394, 124
    %v442 = vpop.permute.xlu0 %441
    %443 = vrot.lane.b32.xlu0 %v400, 124
    %v444 = vpop.permute.xlu0 %443
    %445 = vrot.lane.b32.xlu0 %v402, 124
    %v446 = vpop.permute.xlu0 %445
    %447 = vrot.lane.b32.xlu0 %v404, 124
    %v448 = vpop.permute.xlu0 %447
    %449 = vrot.lane.b32.xlu0 %v406, 124
    %v450 = vpop.permute.xlu0 %449
    %451 = vrot.lane.b32.xlu0 %v412, 124
    %v452 = vpop.permute.xlu0 %451
    %453 = vrot.lane.b32.xlu0 %v414, 124
    %v454 = vpop.permute.xlu0 %453
    %455 = vrot.lane.b32.xlu0 %v416, 124
    %v456 = vpop.permute.xlu0 %455
    %457 = vrot.lane.b32.xlu0 %v418, 124
    %v458 = vpop.permute.xlu0 %457
    %459 = vrot.lane.b32.xlu0 %v424, 124
    %v460 = vpop.permute.xlu0 %459
    %461 = vrot.lane.b32.xlu0 %v426, 124
    %v462 = vpop.permute.xlu0 %461
    %463 = vrot.lane.b32.xlu0 %v428, 124
    %v464 = vpop.permute.xlu0 %463
    %465 = vrot.lane.b32.xlu0 %v430, 124
    %v466 = vpop.permute.xlu0 %465
    %vm483 = vcmask 187392
    %v484 = vsel %vm483, %v373, %v424
    %v485 = vsel %vm483, %v374, %v426
    %v486 = vsel %vm483, %v375, %v428
    %v487 = vsel %vm483, %v376, %v430
    %v488 = vsel %vm483, %v388, %v436
    %v489 = vsel %vm483, %v390, %v438
    %v490 = vsel %vm483, %v392, %v440
    %v491 = vsel %vm483, %v394, %v442
    %v492 = vsel %vm483, %v400, %v444
    %v493 = vsel %vm483, %v402, %v446
    %v494 = vsel %vm483, %v404, %v448
    %v495 = vsel %vm483, %v406, %v450
    %v496 = vsel %vm483, %v412, %v452
    %v497 = vsel %vm483, %v414, %v454
    %v498 = vsel %vm483, %v416, %v456
    %v499 = vsel %vm483, %v418, %v458
    %v500 = vsel %vm483, %v424, %v460
    %v501 = vsel %vm483, %v426, %v462
    %v502 = vsel %vm483, %v428, %v464
    %v503 = vsel %vm483, %v430, %v466
    %505 = vset.pattern.permute.xlu0 0
    %506 = vperm.xlu0 %505, %v381
    %v507 = vpop.permute.xlu0 %506
    %509 = vset.pattern.permute.xlu0 0
    %510 = vperm.xlu0 %509, %v382
    %v511 = vpop.permute.xlu0 %510
    %vm512 = vcmask 1045504
    %v513 = vrot.slane %v507, 2
    %v514 = vrot.slane %v511, 2
    %v515 = vsel %vm512, %v513, %v514
    %vm518 = vcmask 261120
    %v520 = vsel %vm518, %v378, 0
    %v523 = vsel %vm518, %v380, 0
    %525 = vmatprep.subr.mxu0 0.0
    %526 = vmatpush1.msra.mxu0 %v484
    %527 = vmatprep.subr.mxu0 0.0
    %528 = vmatpush1.msra.mxu0 %v485
    %529 = vmatprep.subr.mxu0 0.0
    %530 = vmatpush1.msra.mxu0 %v486
    %531 = vmatprep.subr.mxu0 0.0
    %532 = vmatpush1.msra.mxu0 %v487
    %533 = vmatprep.subr.mxu0 0.0
    %534 = vmatpush1.msra.mxu0 %v488
    %535 = vmatprep.subr.mxu0 0.0
    %536 = vmatpush1.msra.mxu0 %v489
    %537 = vmatprep.subr.mxu0 0.0
    %538 = vmatpush1.msra.mxu0 %v490
    %539 = vmatprep.subr.mxu0 0.0
    %540 = vmatpush1.msra.mxu0 %v491
    %541 = vmatprep.subr.mxu0 0.0
    %542 = vmatpush1.msra.mxu0 %v492
    %543 = vmatprep.subr.mxu0 0.0
    %544 = vmatpush1.msra.mxu0 %v493
    %545 = vmatprep.subr.mxu0 0.0
    %546 = vmatpush1.msra.mxu0 %v494
    %547 = vmatprep.subr.mxu0 0.0
    %548 = vmatpush1.msra.mxu0 %v495
    %549 = vmatprep.subr.mxu0 0.0
    %550 = vmatpush1.msra.mxu0 %v496
    %551 = vmatprep.subr.mxu0 0.0
    %552 = vmatpush1.msra.mxu0 %v497
    %553 = vmatprep.subr.mxu0 0.0
    %554 = vmatpush1.msra.mxu0 %v498
    %555 = vmatprep.subr.mxu0 0.0
    %556 = vmatpush1.msra.mxu0 %v499
    %557 = vmatprep.subr.mxu0 0.0
    %558 = vmatpush1.msra.mxu0 %v500
    %559 = vmatprep.subr.mxu0 0.0
    %560 = vmatpush1.msra.mxu0 %v501
    %561 = vmatprep.subr.mxu0 0.0
    %562 = vmatpush1.msra.mxu0 %v502
    %563 = vmatprep.subr.mxu0 0.0
    %564 = vmatpush1.msra.mxu0 %v503
    %565 = vmatprep.subr.mxu0 0.0
    %566 = vmatpush1.msra.mxu0 0.0
    %567 = vmatprep.subr.mxu0 0.0
    %568 = vmatpush1.msra.mxu0 0.0
    %569 = vmatprep.subr.mxu0 0.0
    %570 = vmatpush1.msra.mxu0 0.0
    %571 = vmatprep.subr.mxu0 0.0
    %572 = vmatpush1.msra.mxu0 0.0
    %573 = vmatprep.subr.mxu0 0.0
    %574 = vmatpush1.msra.mxu0 0.0
    %575 = vmatprep.subr.mxu0 0.0
    %576 = vmatpush1.msra.mxu0 0.0
    %577 = vmatprep.subr.mxu0 0.0
    %578 = vmatpush1.msra.mxu0 0.0
    %579 = vmatprep.subr.mxu0 0.0
    %580 = vmatpush1.msra.mxu0 0.0
    %581 = vmatprep.subr.mxu0 0.0
    %582 = vmatpush1.msra.mxu0 0.0
    %583 = vmatprep.subr.mxu0 0.0
    %584 = vmatpush1.msra.mxu0 0.0
    %585 = vmatprep.subr.mxu0 0.0
    %586 = vmatpush1.msra.mxu0 0.0
    %587 = vmatprep.subr.mxu0 0.0
    %588 = vmatpush1.msra.mxu0 0.0
    %589 = vmatprep.mubr.f32.mxu0 %v520
    %590 = vmatmul.mubr.f32.gmra.mrb[0].mxu0 %v377
    %v591 = vpop.f32.mrb[0].mxu0
    %v592 = vadd.f32 %v515, %v591
    %v593 = vpop.f32.mrb[0].mxu0
    %594 = vmatprep.mubr.f32.mxu0 %v523
    %595 = vmatmul.mubr.f32.gmra.mrb[0].mxu0 %v379
    %v596 = vpop.f32.mrb[0].mxu0
    %v597 = vadd.f32 %v514, %v596
    %v598 = vpop.f32.mrb[0].mxu0
    %599 = vdwg.mxu0
    %v600 = vmax.f32 %v592, 0.0
    %v601 = vmax.f32 %v597, 0.0
    %v602 = vld [vmem:[#allocation4 + $0xa0] sm:$0xf0]
    %v603 = vld [vmem:[#allocation4 + $0xb0] sm:$0xff]
    %v604 = vld [vmem:[#allocation4 + $0xc0] sm:$0xff]
    %v605 = vld [vmem:[#allocation4 + $0xd0] sm:$0xff]
    %v606 = vld [vmem:[#allocation4 + $0xe0] sm:$0xff]
    %v607 = vld [vmem:[#allocation4 + $0xf0] sm:$0xff]
    %v608 = vld [vmem:[#allocation4 + $0x100] sm:$0x3]
    %v609 = vld [vmem:[#allocation4 + $0x102] ss:$0 sm:$0xff]
    %611 = vset.pattern.permute.xlu0 0
    %612 = vperm.xlu0 %611, %v609
    %v613 = vpop.permute.xlu0 %612
    %v622 = vrot.slane %v602, 4
    %v623 = vrot.slane %v603, 4
    %v624 = vsel %vm74, %v622, %v623
    %v625 = vrot.slane %v604, 4
    %v626 = vsel %vm74, %v623, %v625
    %v627 = vrot.slane %v605, 4
    %v628 = vsel %vm74, %v625, %v627
    %v629 = vrot.slane %v606, 4
    %v630 = vsel %vm74, %v627, %v629
    %v631 = vrot.slane %v607, 4
    %v632 = vsel %vm74, %v629, %v631
    %v633 = vrot.slane %v608, 4
    %v634 = vsel %vm74, %v631, %v633
    %vm640 = vcmask 375808
    %v642 = vsel %vm640, %v600, 0
    %v645 = vsel %vm640, %v601, 0
    %v647 = vsel %vm512, %v634, 0
    %649 = vmatprep.subr.mxu0 0.0
    %650 = vmatpush1.msra.mxu0 %v624
    %651 = vmatprep.subr.mxu0 0.0
    %652 = vmatpush1.msra.mxu0 %v626
    %653 = vmatprep.subr.mxu0 0.0
    %654 = vmatpush1.msra.mxu0 %v628
    %655 = vmatprep.subr.mxu0 0.0
    %656 = vmatpush1.msra.mxu0 %v630
    %657 = vmatprep.subr.mxu0 0.0
    %658 = vmatpush1.msra.mxu0 %v632
    %659 = vmatprep.subr.mxu0 0.0
    %660 = vmatpush1.msra.mxu0 %v647
    %661 = vmatprep.subr.mxu0 0.0
    %662 = vmatpush1.msra.mxu0 0.0
    %663 = vmatprep.subr.mxu0 0.0
    %664 = vmatpush1.msra.mxu0 0.0
    %665 = vmatprep.subr.mxu0 0.0
    %666 = vmatpush1.msra.mxu0 0.0
    %667 = vmatprep.subr.mxu0 0.0
    %668 = vmatpush1.msra.mxu0 0.0
    %669 = vmatprep.subr.mxu0 0.0
    %670 = vmatpush1.msra.mxu0 0.0
    %671 = vmatprep.subr.mxu0 0.0
    %672 = vmatpush1.msra.mxu0 0.0
    %673 = vmatprep.subr.mxu0 0.0
    %674 = vmatpush1.msra.mxu0 0.0
    %675 = vmatprep.subr.mxu0 0.0
    %676 = vmatpush1.msra.mxu0 0.0
    %677 = vmatprep.subr.mxu0 0.0
    %678 = vmatpush1.msra.mxu0 0.0
    %679 = vmatprep.subr.mxu0 0.0
    %680 = vmatpush1.msra.mxu0 0.0
    %681 = vmatprep.subr.mxu0 0.0
    %682 = vmatpush1.msra.mxu0 0.0
    %683 = vmatprep.subr.mxu0 0.0
    %684 = vmatpush1.msra.mxu0 0.0
    %685 = vmatprep.subr.mxu0 0.0
    %686 = vmatpush1.msra.mxu0 0.0
    %687 = vmatprep.subr.mxu0 0.0
    %688 = vmatpush1.msra.mxu0 0.0
    %689 = vmatprep.subr.mxu0 0.0
    %690 = vmatpush1.msra.mxu0 0.0
    %691 = vmatprep.subr.mxu0 0.0
    %692 = vmatpush1.msra.mxu0 0.0
    %693 = vmatprep.subr.mxu0 0.0
    %694 = vmatpush1.msra.mxu0 0.0
    %695 = vmatprep.subr.mxu0 0.0
    %696 = vmatpush1.msra.mxu0 0.0
    %697 = vmatprep.subr.mxu0 0.0
    %698 = vmatpush1.msra.mxu0 0.0
    %699 = vmatprep.subr.mxu0 0.0
    %700 = vmatpush1.msra.mxu0 0.0
    %701 = vmatprep.subr.mxu0 0.0
    %702 = vmatpush1.msra.mxu0 0.0
    %703 = vmatprep.subr.mxu0 0.0
    %704 = vmatpush1.msra.mxu0 0.0
    %705 = vmatprep.subr.mxu0 0.0
    %706 = vmatpush1.msra.mxu0 0.0
    %707 = vmatprep.subr.mxu0 0.0
    %708 = vmatpush1.msra.mxu0 0.0
    %709 = vmatprep.subr.mxu0 0.0
    %710 = vmatpush1.msra.mxu0 0.0
    %711 = vmatprep.subr.mxu0 0.0
    %712 = vmatpush1.msra.mxu0 0.0
    %713 = vmatprep.mubr.f32.mxu0 0.0
    %714 = vmatmul.mubr.f32.gmra.mrb[0].mxu0 %v642
    %v715 = vpop.f32.mrb[0].mxu0
    %v716 = vadd.f32 %v613, %v715
    %v717 = vpop.f32.mrb[0].mxu0
    %718 = vmatprep.mubr.f32.mxu0 0.0
    %719 = vmatmul.mubr.f32.gmra.mrb[0].mxu0 %v645
    %v720 = vpop.f32.mrb[0].mxu0
    %v721 = vadd.f32 %v613, %v720
    %v722 = vpop.f32.mrb[0].mxu0
    %723 = vdwg.mxu0
    %v724 = vxor.u32 %v716, 2147483648
    %v725 = vxor.u32 %v721, 2147483648
    %v726 = vmul.f32 %v724, 1.442695
    %v727 = vpow.pop %v726
    %v728 = vmul.f32 %v725, 1.442695
    %v729 = vpow.pop %v728
    %v730 = vadd.f32 %v727, 1.0
    %v731 = vadd.f32 %v729, 1.0
    %v732 = vrcp.pop %v730
    %v733 = vmul.f32 1.0, %v732
    %v734 = vrcp.pop %v731
    %v735 = vmul.f32 1.0, %v734
    %vm736 = vcmask 15360
    %737 = vst.msk [vmem:[%s2] sm:$0xff] %vm736, %v733
    %vm738 = vcmask 9216
    %739 = vst.msk [vmem:[%s2 + $0x8] sm:$0x3] %vm738, %v735
    // Predicated region
    $region18: #{tpu_custom_call.1} parent=1 // pred_check
      _
    $region19: #{tpu_custom_call.1} parent=1 // pred_check_branch
      %741 = sbr.rel (0) target = $region21
    $region20: #{tpu_custom_call.1} parent=1 // pred_region
      _
    $region21: #{tpu_custom_call.1} parent=1 // pred_fallthru
      _
    // Predicated region
    $region22: #{tpu_custom_call.1} parent=1 // pred_check
      _
    $region23: #{tpu_custom_call.1} parent=1 // pred_check_branch
      %743 = sbr.rel (0) target = $region25
    $region24: #{tpu_custom_call.1} parent=1 // pred_region
      _
    $region25: #{tpu_custom_call.1} parent=1 // pred_fallthru
      _
    %744 = vsyncpa [#allocation3], 1
    %745 = vsyncpa [#allocation5], 1

</llo_original>
